<compile_context>
chip_gen: v7x
topology: tpu7x:2x2x1
jax: 0.10.0
libtpu: 0.0.40
codegen_flags: <defaults>
</compile_context>

<pallas_src>
import jax
import jax.numpy as jnp
from jax.experimental import pallas as pl
from jax.experimental.pallas import tpu as pltpu

LANE = 128          # TPU vreg lane width
TB_MAX = 2048       # max batch lanes per grid step (f32 x-tile: 2*2048*4B = 16 KiB)

HIDDEN = 4          # Linear(2, 4)
IN_FEATURES = 2


def xor_mlp_kernel(params_ref, x_ref, o_ref):
    """params_ref: SMEM f32[17]  (w1 row-major [0:8], b1 [8:12], w2 [12:16], b2 [16])
    x_ref:      VMEM f32[2, TB]   (features on sublanes, batch on lanes)
    o_ref:      VMEM f32[1, TB]
    """
    x0 = x_ref[0:1, :]          # (1, TB)  feature 0 across the batch lanes
    x1 = x_ref[1:2, :]          # (1, TB)  feature 1 across the batch lanes

    z = params_ref[16]          # b2 (scalar); broadcasts over the lane vector
    for j in range(HIDDEN):     # fully unrolled: 4 hidden units
        w1_0j = params_ref[j]               # w1[0, j]
        w1_1j = params_ref[HIDDEN + j]      # w1[1, j]
        b1_j = params_ref[2 * HIDDEN + j]   # b1[j]
        w2_j = params_ref[3 * HIDDEN + j]   # w2[j, 0]
        h_j = jnp.maximum(x0 * w1_0j + x1 * w1_1j + b1_j, 0.0)   # ReLU on the VPU
        z = z + h_j * w2_j

    o_ref[...] = jax.nn.sigmoid(z)          # EUP transcendental, lane-dense store


def xor_model_forward(x, w1, b1, w2, b2):
    """x: (B, 2) float32 -> (B, 1) float32.

    w1: (2, 4)  (pre-transposed, i.e. h = x @ w1 + b1), b1: (4,) or (1, 4)
    w2: (4, 1)  (pre-transposed, i.e. y = h @ w2 + b2), b2: (1,) or (1, 1)
    """
    B = x.shape[0]

    # Flatten the 17 parameters into one SMEM-resident scalar table.
    params = jnp.concatenate([
        w1.reshape(-1).astype(jnp.float32),   # [0:8]   w1 row-major
        b1.reshape(-1).astype(jnp.float32),   # [8:12]  b1
        w2.reshape(-1).astype(jnp.float32),   # [12:16] w2
        b2.reshape(-1).astype(jnp.float32),   # [16]    b2
    ])

    # Batch on lanes: (B, 2) -> (2, B), padded so the lane axis tiles by tb.
    if B <= TB_MAX:
        tb = max(LANE, ((B + LANE - 1) // LANE) * LANE)
    else:
        tb = TB_MAX
    b_pad = ((B + tb - 1) // tb) * tb

    xt = x.astype(jnp.float32).T                       # (2, B)
    if b_pad != B:
        xt = jnp.pad(xt, ((0, 0), (0, b_pad - B)))     # (2, B_pad)

    grid = (b_pad // tb,)

    out = pl.pallas_call(
        xor_mlp_kernel,
        out_shape=jax.ShapeDtypeStruct((1, b_pad), jnp.float32),
        grid_spec=pltpu.PrefetchScalarGridSpec(
            # Scalar prefetch: the 17 params are DMA'd to SMEM before the grid
            # runs; the kernel sees them as its first (SMEM) ref.
            num_scalar_prefetch=1,
            grid=grid,
            in_specs=[
                # x tile: full feature dim (2 == array dim), tb batch lanes
                # per grid step (tb % 128 == 0).
                pl.BlockSpec((IN_FEATURES, tb), lambda i, params: (0, i)),
            ],
            out_specs=pl.BlockSpec((1, tb), lambda i, params: (0, i)),
        ),
        compiler_params=pltpu.CompilerParams(
            # Batch tiles are independent -> shard across TCs (v7x megacore).
            dimension_semantics=("parallel",)),
    )(params, xt)

    return out[0, :B][:, None]                         # (B, 1)


if __name__ == "__main__":
    key = jax.random.PRNGKey(0)
    kx, k1, k2, k3, k4 = jax.random.split(key, 5)

    B = 8  # batch of XOR-style 2-feature inputs

    # Deterministic parameter init (shapes from the PyTorch module):
    #   hidden: Linear(2, 4)  -> W1 stored transposed as (2, 4), b1 (1, 4)
    #   output: Linear(4, 1)  -> W2 stored transposed as (4, 1), b2 (1, 1)
    w1 = jax.random.normal(k1, (2, 4), dtype=jnp.float32) * 0.5
    b1 = jax.random.normal(k2, (1, 4), dtype=jnp.float32) * 0.1
    w2 = jax.random.normal(k3, (4, 1), dtype=jnp.float32) * 0.5
    b2 = jax.random.normal(k4, (1, 1), dtype=jnp.float32) * 0.1

    x = jax.random.normal(kx, (B, 2), dtype=jnp.float32)

    out = xor_model_forward(x, w1, b1, w2, b2)
    out = jax.block_until_ready(out)

    # Cross-check against pure-JAX reference of the same forward pass.
    ref = jax.nn.sigmoid(jnp.maximum(x @ w1 + b1, 0.0) @ w2 + b2)
    assert out.shape == (B, 1)
    assert jnp.allclose(out, ref, atol=1e-5, rtol=1e-5)

    print("KERNEL_OK")
</pallas_src>

<mosaic_0001>
module attributes {stable_mosaic.version = 11 : i64} {
  func.func @xor_mlp_kernel(%arg0: i32, %arg1: memref<17xf32, #tpu.memory_space<smem>>, %arg2: memref<2x128xf32, #tpu.memory_space<vmem>>, %arg3: memref<1x128xf32, #tpu.memory_space<vmem>>) attributes {dimension_semantics = [#tpu.dimension_semantics<parallel>], iteration_bounds = array<i64: 1>, scalar_prefetch = 1 : i64, scratch_operands = 0 : i64, tpu.core_type = #tpu.core_type<tc>, window_params = [{transform_indices = @transform_0, window_bounds = array<i64: 2, 128>}, {transform_indices = @transform_1, window_bounds = array<i64: 1, 128>}]} {
    %c0 = arith.constant 0 : index
    %c0_0 = arith.constant 0 : index
    %0 = vector.load %arg2[%c0, %c0_0] : memref<2x128xf32, #tpu.memory_space<vmem>>, vector<1x128xf32>
    %c1 = arith.constant 1 : index
    %c0_1 = arith.constant 0 : index
    %1 = vector.load %arg2[%c1, %c0_1] : memref<2x128xf32, #tpu.memory_space<vmem>>, vector<1x128xf32>
    %c16 = arith.constant 16 : index
    %2 = memref.load %arg1[%c16] : memref<17xf32, #tpu.memory_space<smem>>
    %c0_2 = arith.constant 0 : index
    %3 = memref.load %arg1[%c0_2] : memref<17xf32, #tpu.memory_space<smem>>
    %c4 = arith.constant 4 : index
    %4 = memref.load %arg1[%c4] : memref<17xf32, #tpu.memory_space<smem>>
    %c8 = arith.constant 8 : index
    %5 = memref.load %arg1[%c8] : memref<17xf32, #tpu.memory_space<smem>>
    %c12 = arith.constant 12 : index
    %6 = memref.load %arg1[%c12] : memref<17xf32, #tpu.memory_space<smem>>
    %7 = vector.broadcast %3 : f32 to vector<1x128xf32>
    %8 = arith.mulf %0, %7 : vector<1x128xf32>
    %9 = vector.broadcast %4 : f32 to vector<1x128xf32>
    %10 = arith.mulf %1, %9 : vector<1x128xf32>
    %11 = arith.addf %8, %10 : vector<1x128xf32>
    %12 = vector.broadcast %5 : f32 to vector<1x128xf32>
    %13 = arith.addf %11, %12 : vector<1x128xf32>
    %cst = arith.constant 0.000000e+00 : f32
    %14 = vector.broadcast %cst : f32 to vector<1x128xf32>
    %15 = arith.maximumf %13, %14 : vector<1x128xf32>
    %16 = vector.broadcast %6 : f32 to vector<1x128xf32>
    %17 = arith.mulf %15, %16 : vector<1x128xf32>
    %18 = vector.broadcast %2 : f32 to vector<1x128xf32>
    %19 = arith.addf %18, %17 : vector<1x128xf32>
    %c1_3 = arith.constant 1 : index
    %20 = memref.load %arg1[%c1_3] : memref<17xf32, #tpu.memory_space<smem>>
    %c5 = arith.constant 5 : index
    %21 = memref.load %arg1[%c5] : memref<17xf32, #tpu.memory_space<smem>>
    %c9 = arith.constant 9 : index
    %22 = memref.load %arg1[%c9] : memref<17xf32, #tpu.memory_space<smem>>
    %c13 = arith.constant 13 : index
    %23 = memref.load %arg1[%c13] : memref<17xf32, #tpu.memory_space<smem>>
    %24 = vector.broadcast %20 : f32 to vector<1x128xf32>
    %25 = arith.mulf %0, %24 : vector<1x128xf32>
    %26 = vector.broadcast %21 : f32 to vector<1x128xf32>
    %27 = arith.mulf %1, %26 : vector<1x128xf32>
    %28 = arith.addf %25, %27 : vector<1x128xf32>
    %29 = vector.broadcast %22 : f32 to vector<1x128xf32>
    %30 = arith.addf %28, %29 : vector<1x128xf32>
    %cst_4 = arith.constant 0.000000e+00 : f32
    %31 = vector.broadcast %cst_4 : f32 to vector<1x128xf32>
    %32 = arith.maximumf %30, %31 : vector<1x128xf32>
    %33 = vector.broadcast %23 : f32 to vector<1x128xf32>
    %34 = arith.mulf %32, %33 : vector<1x128xf32>
    %35 = arith.addf %19, %34 : vector<1x128xf32>
    %c2 = arith.constant 2 : index
    %36 = memref.load %arg1[%c2] : memref<17xf32, #tpu.memory_space<smem>>
    %c6 = arith.constant 6 : index
    %37 = memref.load %arg1[%c6] : memref<17xf32, #tpu.memory_space<smem>>
    %c10 = arith.constant 10 : index
    %38 = memref.load %arg1[%c10] : memref<17xf32, #tpu.memory_space<smem>>
    %c14 = arith.constant 14 : index
    %39 = memref.load %arg1[%c14] : memref<17xf32, #tpu.memory_space<smem>>
    %40 = vector.broadcast %36 : f32 to vector<1x128xf32>
    %41 = arith.mulf %0, %40 : vector<1x128xf32>
    %42 = vector.broadcast %37 : f32 to vector<1x128xf32>
    %43 = arith.mulf %1, %42 : vector<1x128xf32>
    %44 = arith.addf %41, %43 : vector<1x128xf32>
    %45 = vector.broadcast %38 : f32 to vector<1x128xf32>
    %46 = arith.addf %44, %45 : vector<1x128xf32>
    %cst_5 = arith.constant 0.000000e+00 : f32
    %47 = vector.broadcast %cst_5 : f32 to vector<1x128xf32>
    %48 = arith.maximumf %46, %47 : vector<1x128xf32>
    %49 = vector.broadcast %39 : f32 to vector<1x128xf32>
    %50 = arith.mulf %48, %49 : vector<1x128xf32>
    %51 = arith.addf %35, %50 : vector<1x128xf32>
    %c3 = arith.constant 3 : index
    %52 = memref.load %arg1[%c3] : memref<17xf32, #tpu.memory_space<smem>>
    %c7 = arith.constant 7 : index
    %53 = memref.load %arg1[%c7] : memref<17xf32, #tpu.memory_space<smem>>
    %c11 = arith.constant 11 : index
    %54 = memref.load %arg1[%c11] : memref<17xf32, #tpu.memory_space<smem>>
    %c15 = arith.constant 15 : index
    %55 = memref.load %arg1[%c15] : memref<17xf32, #tpu.memory_space<smem>>
    %56 = vector.broadcast %52 : f32 to vector<1x128xf32>
    %57 = arith.mulf %0, %56 : vector<1x128xf32>
    %58 = vector.broadcast %53 : f32 to vector<1x128xf32>
    %59 = arith.mulf %1, %58 : vector<1x128xf32>
    %60 = arith.addf %57, %59 : vector<1x128xf32>
    %61 = vector.broadcast %54 : f32 to vector<1x128xf32>
    %62 = arith.addf %60, %61 : vector<1x128xf32>
    %cst_6 = arith.constant 0.000000e+00 : f32
    %63 = vector.broadcast %cst_6 : f32 to vector<1x128xf32>
    %64 = arith.maximumf %62, %63 : vector<1x128xf32>
    %65 = vector.broadcast %55 : f32 to vector<1x128xf32>
    %66 = arith.mulf %64, %65 : vector<1x128xf32>
    %67 = arith.addf %51, %66 : vector<1x128xf32>
    %68 = arith.negf %67 : vector<1x128xf32>
    %69 = math.exp %68 : vector<1x128xf32>
    %cst_7 = arith.constant 1.000000e+00 : f32
    %70 = vector.broadcast %cst_7 : f32 to vector<1x128xf32>
    %71 = arith.addf %70, %69 : vector<1x128xf32>
    %72 = arith.divf %70, %71 : vector<1x128xf32>
    %c0_8 = arith.constant 0 : index
    %c0_9 = arith.constant 0 : index
    %73 = vector.load %arg3[%c0_8, %c0_9] : memref<1x128xf32, #tpu.memory_space<vmem>>, vector<1x128xf32>
    tpu.vector_store %arg3[%c0_8, %c0_9], %72 {strides = array<i32>} : memref<1x128xf32, #tpu.memory_space<vmem>>, vector<1x128xf32>,
    return
  }
  func.func @transform_0(%arg0: i32, %arg1: memref<17xf32, #tpu.memory_space<smem>>) -> (i32, i32) {
    %c0_i32 = arith.constant 0 : i32
    %c0_i32_0 = arith.constant 0 : i32
    return %c0_i32, %arg0 : i32, i32
  }
  func.func @transform_1(%arg0: i32, %arg1: memref<17xf32, #tpu.memory_space<smem>>) -> (i32, i32) {
    %c0_i32 = arith.constant 0 : i32
    %c0_i32_0 = arith.constant 0 : i32
    return %c0_i32, %arg0 : i32, i32
  }
}

</mosaic_0001>

<llo_original>
// kernel: tpu_custom_call.1
$region0: #{tpu_custom_call.1}
  #allocation0 [shape = 'u32[]', space=smem, size = 0x4, offset = 0x4, fixed_abs, tag = 'smem constant byte address 0x4 - core index']
  #allocation1 [shape = 'u32[144,128]{1,0:T(1,128)}', space=vmem, size = 0x12000, scoped, tag = 'internal scratch']
  #allocation2 [shape = 's32[1]{0}', space=sflag, size = 0x4, scoped, tag = 'scoped memory for tpu_custom_call.1']
  #allocation3 [shape = 'u8[512]{0}', space=smem, size = 0x200, scoped, tag = 'prefetched SMEM operand 0']
  %s0 = inlined_call_operand.hbm [shape: f32[17], index: 0, kind: input, shape index: {}]
  %s1 = inlined_call_operand.vmem [shape: f32[2,128], index: 1, kind: input, shape index: {}]
  %s2 = inlined_call_operand.hbm [shape: f32[1,128], index: 2, kind: output, shape index: {}]
  %s3 = sld [smem:[#allocation0]]
  $region14: #{tpu_custom_call.1} parent=0
    _
  %s5 = ssub.s32 1, %s3
  %s6 = scalar_select 0, %s5, %s3
  %8 = dma.hbm_to_smem %s0, 16, [#allocation3], [#allocation2]
  %9 = dma.done [#allocation2], 16
  %10 = sfence
  $region1: #{tpu_custom_call.1} parent=0
    #allocation4 [shape = 'u8[512]{0}', space=vmem, size = 0x400, scoped, tag = 'output window, operand 0, single buffered']
    #allocation5 [shape = 's32[1]{0}', space=sflag, size = 0x4, scoped, tag = 'scoped memory for tpu_custom_call.1']
    %11 = vsyncpa [#allocation5], 0
    // Predicated region
    $region2: #{tpu_custom_call.1} parent=1 // pred_check
      _
    $region3: #{tpu_custom_call.1} parent=1 // pred_check_branch
      %13 = sbr.rel (0) target = $region5
    $region4: #{tpu_custom_call.1} parent=1 // pred_region
      _
    $region5: #{tpu_custom_call.1} parent=1 // pred_fallthru
      _
    %v14 = vld [vmem:[%s1] sm:$0x1]
    %v15 = vld [vmem:[%s1 + $0x1] sm:$0x1]
    %s16 = sld [smem:[#allocation3 + $0x10]]
    %s17 = sld [smem:[#allocation3]]
    %s18 = sld [smem:[#allocation3 + $0x4]]
    %s19 = sld [smem:[#allocation3 + $0x8]]
    %s20 = sld [smem:[#allocation3 + $0xc]]
    %v21 = vstv %s17
    %v22 = vmul.f32 %v14, %v21
    %v23 = vstv %s18
    %v24 = vmul.f32 %v15, %v23
    %v25 = vadd.f32 %v22, %v24
    %v26 = vstv %s19
    %v27 = vadd.f32 %v25, %v26
    %v28 = vmax.f32 %v27, 0.0
    %v29 = vstv %s20
    %v30 = vmul.f32 %v28, %v29
    %v31 = vstv %s16
    %v32 = vadd.f32 %v31, %v30
    %s33 = sld [smem:[#allocation3 + $0x1]]
    %s34 = sld [smem:[#allocation3 + $0x5]]
    %s35 = sld [smem:[#allocation3 + $0x9]]
    %s36 = sld [smem:[#allocation3 + $0xd]]
    %v37 = vstv %s33
    %v38 = vmul.f32 %v14, %v37
    %v39 = vstv %s34
    %v40 = vmul.f32 %v15, %v39
    %v41 = vadd.f32 %v38, %v40
    %v42 = vstv %s35
    %v43 = vadd.f32 %v41, %v42
    %v44 = vmax.f32 %v43, 0.0
    %v45 = vstv %s36
    %v46 = vmul.f32 %v44, %v45
    %v47 = vadd.f32 %v32, %v46
    %s48 = sld [smem:[#allocation3 + $0x2]]
    %s49 = sld [smem:[#allocation3 + $0x6]]
    %s50 = sld [smem:[#allocation3 + $0xa]]
    %s51 = sld [smem:[#allocation3 + $0xe]]
    %v52 = vstv %s48
    %v53 = vmul.f32 %v14, %v52
    %v54 = vstv %s49
    %v55 = vmul.f32 %v15, %v54
    %v56 = vadd.f32 %v53, %v55
    %v57 = vstv %s50
    %v58 = vadd.f32 %v56, %v57
    %v59 = vmax.f32 %v58, 0.0
    %v60 = vstv %s51
    %v61 = vmul.f32 %v59, %v60
    %v62 = vadd.f32 %v47, %v61
    %s63 = sld [smem:[#allocation3 + $0x3]]
    %s64 = sld [smem:[#allocation3 + $0x7]]
    %s65 = sld [smem:[#allocation3 + $0xb]]
    %s66 = sld [smem:[#allocation3 + $0xf]]
    %v67 = vstv %s63
    %v68 = vmul.f32 %v14, %v67
    %v69 = vstv %s64
    %v70 = vmul.f32 %v15, %v69
    %v71 = vadd.f32 %v68, %v70
    %v72 = vstv %s65
    %v73 = vadd.f32 %v71, %v72
    %v74 = vmax.f32 %v73, 0.0
    %v75 = vstv %s66
    %v76 = vmul.f32 %v74, %v75
    %v77 = vadd.f32 %v62, %v76
    %v78 = vxor.u32 %v77, 2147483648
    %v79 = vmul.f32 %v78, 1.442695
    %v80 = vpow.pop %v79
    %v81 = vadd.f32 %v80, 1.0
    %v82 = vrcp.pop %v81
    %v83 = vmul.f32 1.0, %v82
    %84 = vst [vmem:[#allocation4] sm:$0x1] %v83
    // Predicated region
    $region6: #{tpu_custom_call.1} parent=1 // pred_check
      _
    $region7: #{tpu_custom_call.1} parent=1 // pred_check_branch
      %86 = sbr.rel (0) target = $region9
    $region8: #{tpu_custom_call.1} parent=1 // pred_region
      %s88 = ssub.s32 16, 16
      %89 = vsyncadd [#allocation5], %s88
      %s91 = sshll.u32 [#allocation4], 4
      %s92 = int_to_ptr.vmem [resolvable:$true] %s91
      %94 = dma.vmem_to_hbm [thread:$0]  %s92, 16, %s2, [#allocation5]
    $region9: #{tpu_custom_call.1} parent=1 // pred_fallthru
      _
    // Predicated region
    $region10: #{tpu_custom_call.1} parent=1 // pred_check
      _
    $region11: #{tpu_custom_call.1} parent=1 // pred_check_branch
      %96 = sbr.rel (0) target = $region13
    $region12: #{tpu_custom_call.1} parent=1 // pred_region
      %97 = dma.done [#allocation5], 16
    $region13: #{tpu_custom_call.1} parent=1 // pred_fallthru
      _
    %98 = vsyncpa [#allocation5], 1

</llo_original>
